<compile_context>
chip_gen: v5e
topology: v5e:2x2
jax: 0.10.0
libtpu: 0.0.40
codegen_flags: <defaults>
</compile_context>

<pallas_src>
import jax
import jax.numpy as jnp
from jax.experimental import pallas as pl
from jax.experimental.pallas import tpu as pltpu


def _round_up(x, m):
    return (x + m - 1) // m * m


def memn2n_kernel(seqs_ref, asps_w_ref, ctxs_mask_ref,
                  w_pack_ref, bx_ref, wq_ref, batt_ref, v_ref,
                  wd_ref, bd_ref,
                  logits_ref, score_ref):
    tb, L, D = seqs_ref.shape
    E = wq_ref.shape[0]

    seqs = seqs_ref[...]             # (tb, L, D), bf16 (MXU side)
    asps_w = asps_w_ref[...]         # (tb, L) f32  == asps_mask / max(asps_len, 1)
    ctxs_mask = ctxs_mask_ref[...]   # (tb, L) f32

    # ---- fused projection: one lane-wide matmul for [seqs @ wk | seqs @ wx] ----
    proj = jnp.dot(seqs.reshape(tb * L, D), w_pack_ref[...],
                   preferred_element_type=jnp.float32)          # (tb*L, 2E) f32
    proj = proj.reshape(tb, L, 2 * E)
    kx = proj[:, :, :E]               # seqs @ wk   (tb, L, E)
    swx = proj[:, :, E:]              # seqs @ wx   (tb, L, E)

    # ---- aspect mean pooling in projected space (linearity of wx) ----
    #   x = (sum_l mask_l * seqs_l / len) @ wx + bx
    x = jnp.sum(asps_w.reshape(tb, L, 1) * swx, axis=1) + bx_ref[...]   # (tb, E)

    # ---- MLP (additive) attention: s_i = v . tanh(W_k m_i + W_q x + b) ----
    # TODO(synk): the original `Attentions` class is not provided; this is the
    # standard MLP-scored attention used by MemN2N-style ABSA models.
    qx = jnp.dot(x, wq_ref[...], preferred_element_type=jnp.float32)    # (tb, E)
    h = jnp.tanh(kx + qx.reshape(tb, 1, E) + batt_ref[...])             # (tb, L, E)
    s = jnp.sum(h * v_ref[...], axis=-1)                                # (tb, L)

    # ---- masked softmax over memory positions (L is the lane axis) ----
    s = jnp.where(ctxs_mask > 0, s, -1e30)
    s = s - jnp.max(s, axis=-1, keepdims=True)
    e = jnp.exp(s)
    alpha = e * pl.reciprocal(jnp.sum(e, axis=-1, keepdims=True), approx=True)

    # ---- attention readout + residual (requires D == E, as in the torch model) ----
    out_attn = jnp.sum(alpha.reshape(tb, L, 1) * seqs.astype(jnp.float32), axis=1)
    x = out_attn + x                                                     # (tb, E)

    # ---- dense classifier ----
    logits = jnp.dot(x, wd_ref[...], preferred_element_type=jnp.float32) + bd_ref[...]

    logits_ref[...] = logits          # (tb, C)
    score_ref[...] = alpha            # (tb, L)


def memn2n_forward(seqs_id, asps_mask, asps_len, ctxs_mask, params,
                   block_b=128, matmul_dtype=jnp.bfloat16):
    """MemN2N forward. Returns (logits (B, C), attention score (B, L))."""
    # Frozen embedding lookup stays in plain JAX (XLA gather).
    # TODO(synk): for very large B*L*D the gather could be moved in-kernel via
    # scalar-prefetched token ids + per-row DMA to avoid the extra HBM round trip.
    seqs = params['embed'][seqs_id].astype(matmul_dtype)          # (B, L, D)
    B, L, D = seqs.shape
    E = params['wx'].shape[1]
    C = params['wd'].shape[1]
    if D != E:
        raise ValueError("MemN2N residual `out + x` requires matching dims "
                         f"(seq embed dim {D} vs hop dim {E}).")

    # Lane-dense per-example weights: fold asps_len into the aspect mask so the
    # kernel's weighted sum IS the masked mean (and len==0 is clamped).
    asps_len = jnp.maximum(asps_len.reshape(B, 1).astype(jnp.float32), 1.0)
    asps_w = asps_mask.astype(jnp.float32) / asps_len             # (B, L)
    ctxs_mask = ctxs_mask.astype(jnp.float32)                     # (B, L)

    # Pack the two (D, E) projections along the output dim -> wider MXU matmul.
    w_pack = jnp.concatenate([params['wk'], params['wx']], axis=1).astype(matmul_dtype)

    # Batch tiling: many examples per grid step to amortize per-step overhead.
    tb = _round_up(min(block_b, _round_up(B, 8)), 8)
    b_pad = _round_up(B, tb)
    if b_pad != B:
        pad = b_pad - B
        seqs = jnp.pad(seqs, ((0, pad), (0, 0), (0, 0)))
        asps_w = jnp.pad(asps_w, ((0, pad), (0, 0)))
        ctxs_mask = jnp.pad(ctxs_mask, ((0, pad), (0, 0)))

    def const_spec(arr):
        return pl.BlockSpec(arr.shape, lambda b, _n=arr.ndim: (0,) * _n)

    in_specs = [
        pl.BlockSpec((tb, L, D), lambda b: (b, 0, 0)),   # seqs
        pl.BlockSpec((tb, L), lambda b: (b, 0)),         # asps_w  (mask / len)
        pl.BlockSpec((tb, L), lambda b: (b, 0)),         # ctxs_mask
        const_spec(w_pack),
        const_spec(params['bx']),
        const_spec(params['wq']),
        const_spec(params['batt']),
        const_spec(params['v']),
        const_spec(params['wd']),
        const_spec(params['bd']),
    ]
    out_specs = [
        pl.BlockSpec((tb, C), lambda b: (b, 0)),         # logits
        pl.BlockSpec((tb, L), lambda b: (b, 0)),         # attention score
    ]
    out_shape = [
        jax.ShapeDtypeStruct((b_pad, C), jnp.float32),
        jax.ShapeDtypeStruct((b_pad, L), jnp.float32),
    ]

    logits, score = pl.pallas_call(
        memn2n_kernel,
        grid=(b_pad // tb,),
        in_specs=in_specs,
        out_specs=out_specs,
        out_shape=out_shape,
        compiler_params=pltpu.CompilerParams(
            dimension_semantics=("parallel",)),
    )(seqs, asps_w, ctxs_mask,
      w_pack,
      params['bx'].astype(jnp.float32),
      params['wq'].astype(jnp.float32),
      params['batt'].astype(jnp.float32),
      params['v'].astype(jnp.float32),
      params['wd'].astype(jnp.float32),
      params['bd'].astype(jnp.float32))

    # matches torch: out.squeeze(dim=1), score.squeeze(dim=1)
    return logits[:B], score[:B]


if __name__ == "__main__":
    B, L, D, E, C, V = 2, 8, 32, 32, 3, 50   # Data.embed_dim == args.embed_dim == 32

    key = jax.random.PRNGKey(0)
    keys = jax.random.split(key, 8)
    params = {
        'embed': 0.1 * jax.random.normal(keys[0], (V, D), jnp.float32),
        'wx':    0.1 * jax.random.normal(keys[1], (D, E), jnp.float32),
        'bx':    jnp.zeros((1, E), jnp.float32),
        'wk':    0.1 * jax.random.normal(keys[2], (D, E), jnp.float32),
        'wq':    0.1 * jax.random.normal(keys[3], (E, E), jnp.float32),
        'batt':  jnp.zeros((1, E), jnp.float32),
        'v':     0.1 * jax.random.normal(keys[4], (1, E), jnp.float32),
        'wd':    0.1 * jax.random.normal(keys[5], (E, C), jnp.float32),
        'bd':    jnp.zeros((1, C), jnp.float32),
    }

    seqs_id = jax.random.randint(keys[6], (B, L), 0, V)
    pos = jnp.arange(L)[None, :]
    ctxs_mask = (pos < jnp.array([[6], [5]])).astype(jnp.float32)          # (B, L)
    asps_mask = (((pos >= 2) & (pos < 4)).astype(jnp.float32)
                 * jnp.ones((B, 1), jnp.float32))                          # (B, L)
    asps_len = jnp.sum(asps_mask, axis=1, keepdims=True)                   # (B, 1)

    logits, score = memn2n_forward(seqs_id, asps_mask, asps_len, ctxs_mask, params)
    jax.block_until_ready((logits, score))
    assert logits.shape == (B, C) and score.shape == (B, L)
    assert bool(jnp.all(jnp.isfinite(logits))) and bool(jnp.all(jnp.isfinite(score)))
    print("KERNEL_OK")
</pallas_src>

<mosaic_0001>
module attributes {stable_mosaic.version = 11 : i64} {
  func.func @memn2n_kernel(%arg0: i32, %arg1: memref<8x8x32xbf16, #tpu.memory_space<vmem>>, %arg2: memref<8x8xf32, #tpu.memory_space<vmem>>, %arg3: memref<8x8xf32, #tpu.memory_space<vmem>>, %arg4: memref<32x64xbf16, #tpu.memory_space<vmem>>, %arg5: memref<1x32xf32, #tpu.memory_space<vmem>>, %arg6: memref<32x32xf32, #tpu.memory_space<vmem>>, %arg7: memref<1x32xf32, #tpu.memory_space<vmem>>, %arg8: memref<1x32xf32, #tpu.memory_space<vmem>>, %arg9: memref<32x3xf32, #tpu.memory_space<vmem>>, %arg10: memref<1x3xf32, #tpu.memory_space<vmem>>, %arg11: memref<8x3xf32, #tpu.memory_space<vmem>>, %arg12: memref<8x8xf32, #tpu.memory_space<vmem>>) attributes {dimension_semantics = [#tpu.dimension_semantics<parallel>], iteration_bounds = array<i64: 1>, scalar_prefetch = 0 : i64, scratch_operands = 0 : i64, tpu.core_type = #tpu.core_type<tc>, window_params = [{transform_indices = @transform_0, window_bounds = array<i64: 8, 8, 32>}, {transform_indices = @transform_1, window_bounds = array<i64: 8, 8>}, {transform_indices = @transform_2, window_bounds = array<i64: 8, 8>}, {pipeline_mode = #tpu.pipeline_mode<synchronous>, transform_indices = @transform_3, window_bounds = array<i64: 32, 64>}, {pipeline_mode = #tpu.pipeline_mode<synchronous>, transform_indices = @transform_4, window_bounds = array<i64: 1, 32>}, {pipeline_mode = #tpu.pipeline_mode<synchronous>, transform_indices = @transform_5, window_bounds = array<i64: 32, 32>}, {pipeline_mode = #tpu.pipeline_mode<synchronous>, transform_indices = @transform_6, window_bounds = array<i64: 1, 32>}, {pipeline_mode = #tpu.pipeline_mode<synchronous>, transform_indices = @transform_7, window_bounds = array<i64: 1, 32>}, {pipeline_mode = #tpu.pipeline_mode<synchronous>, transform_indices = @transform_8, window_bounds = array<i64: 32, 3>}, {pipeline_mode = #tpu.pipeline_mode<synchronous>, transform_indices = @transform_9, window_bounds = array<i64: 1, 3>}, {transform_indices = @transform_10, window_bounds = array<i64: 8, 3>}, {transform_indices = @transform_11, window_bounds = array<i64: 8, 8>}]} {
    %c0 = arith.constant 0 : index
    %c0_0 = arith.constant 0 : index
    %c0_1 = arith.constant 0 : index
    %0 = vector.load %arg1[%c0, %c0_0, %c0_1] : memref<8x8x32xbf16, #tpu.memory_space<vmem>>, vector<8x8x32xbf16>
    %c0_2 = arith.constant 0 : index
    %c0_3 = arith.constant 0 : index
    %1 = vector.load %arg2[%c0_2, %c0_3] : memref<8x8xf32, #tpu.memory_space<vmem>>, vector<8x8xf32>
    %c0_4 = arith.constant 0 : index
    %c0_5 = arith.constant 0 : index
    %2 = vector.load %arg3[%c0_4, %c0_5] : memref<8x8xf32, #tpu.memory_space<vmem>>, vector<8x8xf32>
    %3 = vector.shape_cast %0 : vector<8x8x32xbf16> to vector<64x32xbf16>
    %c0_6 = arith.constant 0 : index
    %c0_7 = arith.constant 0 : index
    %4 = vector.load %arg4[%c0_6, %c0_7] : memref<32x64xbf16, #tpu.memory_space<vmem>>, vector<32x64xbf16>
    %cst = arith.constant dense<0.000000e+00> : vector<64x64xf32>
    %5 = tpu.matmul %3, %4, %cst {dimension_numbers = #tpu.dot_dimension_numbers<[1], [0], [0], [1], [0, 0, 1, 1], [], []>} : vector<64x32xbf16>, vector<32x64xbf16>, vector<64x64xf32> -> vector<64x64xf32>
    %6 = vector.shape_cast %5 : vector<64x64xf32> to vector<8x8x64xf32>
    %7 = vector.extract_strided_slice %6 {offsets = [0, 0, 0], sizes = [8, 8, 32], strides = [1, 1, 1]} : vector<8x8x64xf32> to vector<8x8x32xf32>
    %8 = vector.extract_strided_slice %6 {offsets = [0, 0, 32], sizes = [8, 8, 32], strides = [1, 1, 1]} : vector<8x8x64xf32> to vector<8x8x32xf32>
    %9 = vector.shape_cast %1 : vector<8x8xf32> to vector<8x8x1xf32>
    %10 = vector.broadcast %9 : vector<8x8x1xf32> to vector<8x8x32xf32>
    %11 = arith.mulf %10, %8 : vector<8x8x32xf32>
    %cst_8 = arith.constant dense<0.000000e+00> : vector<8x32xf32>
    %12 = vector.multi_reduction <add>, %11, %cst_8 [1] : vector<8x8x32xf32> to vector<8x32xf32>
    %c0_9 = arith.constant 0 : index
    %c0_10 = arith.constant 0 : index
    %13 = vector.load %arg5[%c0_9, %c0_10] : memref<1x32xf32, #tpu.memory_space<vmem>>, vector<1x32xf32>
    %14 = vector.broadcast %13 : vector<1x32xf32> to vector<8x32xf32>
    %15 = arith.addf %12, %14 : vector<8x32xf32>
    %c0_11 = arith.constant 0 : index
    %c0_12 = arith.constant 0 : index
    %16 = vector.load %arg6[%c0_11, %c0_12] : memref<32x32xf32, #tpu.memory_space<vmem>>, vector<32x32xf32>
    %cst_13 = arith.constant dense<0.000000e+00> : vector<8x32xf32>
    %17 = tpu.matmul %15, %16, %cst_13 {dimension_numbers = #tpu.dot_dimension_numbers<[1], [0], [0], [1], [0, 0, 1, 1], [], []>} : vector<8x32xf32>, vector<32x32xf32>, vector<8x32xf32> -> vector<8x32xf32>
    %18 = vector.shape_cast %17 : vector<8x32xf32> to vector<8x1x32xf32>
    %19 = vector.broadcast %18 : vector<8x1x32xf32> to vector<8x8x32xf32>
    %20 = arith.addf %7, %19 : vector<8x8x32xf32>
    %c0_14 = arith.constant 0 : index
    %c0_15 = arith.constant 0 : index
    %21 = vector.load %arg7[%c0_14, %c0_15] : memref<1x32xf32, #tpu.memory_space<vmem>>, vector<1x32xf32>
    %22 = vector.shape_cast %21 : vector<1x32xf32> to vector<1x1x32xf32>
    %23 = vector.broadcast %22 : vector<1x1x32xf32> to vector<8x8x32xf32>
    %24 = arith.addf %20, %23 : vector<8x8x32xf32>
    %25 = math.tanh %24 : vector<8x8x32xf32>
    %c0_16 = arith.constant 0 : index
    %c0_17 = arith.constant 0 : index
    %26 = vector.load %arg8[%c0_16, %c0_17] : memref<1x32xf32, #tpu.memory_space<vmem>>, vector<1x32xf32>
    %27 = vector.shape_cast %26 : vector<1x32xf32> to vector<1x1x32xf32>
    %28 = vector.broadcast %27 : vector<1x1x32xf32> to vector<8x8x32xf32>
    %29 = arith.mulf %25, %28 : vector<8x8x32xf32>
    %cst_18 = arith.constant dense<0.000000e+00> : vector<8x8xf32>
    %30 = vector.multi_reduction <add>, %29, %cst_18 [2] : vector<8x8x32xf32> to vector<8x8xf32>
    %cst_19 = arith.constant 0.000000e+00 : f32
    %31 = vector.broadcast %cst_19 : f32 to vector<8x8xf32>
    %32 = arith.cmpf ogt, %2, %31 : vector<8x8xf32>
    %cst_20 = arith.constant -1.000000e+30 : f32
    %33 = vector.broadcast %cst_20 : f32 to vector<8x8xf32>
    %34 = arith.select %32, %30, %33 : vector<8x8xi1>, vector<8x8xf32>
    %cst_21 = arith.constant dense<0xFF800000> : vector<8xf32>
    %35 = vector.multi_reduction <maximumf>, %34, %cst_21 [1] : vector<8x8xf32> to vector<8xf32>
    %36 = vector.shape_cast %35 : vector<8xf32> to vector<8x1xf32>
    %37 = vector.broadcast %36 : vector<8x1xf32> to vector<8x8xf32>
    %38 = arith.subf %34, %37 : vector<8x8xf32>
    %39 = math.exp %38 : vector<8x8xf32>
    %cst_22 = arith.constant dense<0.000000e+00> : vector<8xf32>
    %40 = vector.multi_reduction <add>, %39, %cst_22 [1] : vector<8x8xf32> to vector<8xf32>
    %41 = vector.shape_cast %40 : vector<8xf32> to vector<8x1xf32>
    %42 = tpu.reciprocal %41 {approx = true} : vector<8x1xf32> -> vector<8x1xf32>
    %43 = vector.broadcast %42 : vector<8x1xf32> to vector<8x8xf32>
    %44 = arith.mulf %39, %43 : vector<8x8xf32>
    %45 = vector.shape_cast %44 : vector<8x8xf32> to vector<8x8x1xf32>
    %46 = arith.extf %0 : vector<8x8x32xbf16> to vector<8x8x32xf32>
    %47 = vector.broadcast %45 : vector<8x8x1xf32> to vector<8x8x32xf32>
    %48 = arith.mulf %47, %46 : vector<8x8x32xf32>
    %cst_23 = arith.constant dense<0.000000e+00> : vector<8x32xf32>
    %49 = vector.multi_reduction <add>, %48, %cst_23 [1] : vector<8x8x32xf32> to vector<8x32xf32>
    %50 = arith.addf %49, %15 : vector<8x32xf32>
    %c0_24 = arith.constant 0 : index
    %c0_25 = arith.constant 0 : index
    %51 = vector.load %arg9[%c0_24, %c0_25] : memref<32x3xf32, #tpu.memory_space<vmem>>, vector<32x3xf32>
    %cst_26 = arith.constant dense<0.000000e+00> : vector<8x3xf32>
    %52 = tpu.matmul %50, %51, %cst_26 {dimension_numbers = #tpu.dot_dimension_numbers<[1], [0], [0], [1], [0, 0, 1, 1], [], []>} : vector<8x32xf32>, vector<32x3xf32>, vector<8x3xf32> -> vector<8x3xf32>
    %c0_27 = arith.constant 0 : index
    %c0_28 = arith.constant 0 : index
    %53 = vector.load %arg10[%c0_27, %c0_28] : memref<1x3xf32, #tpu.memory_space<vmem>>, vector<1x3xf32>
    %54 = vector.broadcast %53 : vector<1x3xf32> to vector<8x3xf32>
    %55 = arith.addf %52, %54 : vector<8x3xf32>
    %c0_29 = arith.constant 0 : index
    %c0_30 = arith.constant 0 : index
    %56 = vector.load %arg11[%c0_29, %c0_30] : memref<8x3xf32, #tpu.memory_space<vmem>>, vector<8x3xf32>
    tpu.vector_store %arg11[%c0_29, %c0_30], %55 {strides = array<i32>} : memref<8x3xf32, #tpu.memory_space<vmem>>, vector<8x3xf32>,
    %c0_31 = arith.constant 0 : index
    %c0_32 = arith.constant 0 : index
    %57 = vector.load %arg12[%c0_31, %c0_32] : memref<8x8xf32, #tpu.memory_space<vmem>>, vector<8x8xf32>
    tpu.vector_store %arg12[%c0_31, %c0_32], %44 {strides = array<i32>} : memref<8x8xf32, #tpu.memory_space<vmem>>, vector<8x8xf32>,
    return
  }
  func.func @transform_0(%arg0: i32) -> (i32, i32, i32) {
    %c0_i32 = arith.constant 0 : i32
    %c0_i32_0 = arith.constant 0 : i32
    %c0_i32_1 = arith.constant 0 : i32
    return %arg0, %c0_i32, %c0_i32_0 : i32, i32, i32
  }
  func.func @transform_1(%arg0: i32) -> (i32, i32) {
    %c0_i32 = arith.constant 0 : i32
    %c0_i32_0 = arith.constant 0 : i32
    return %arg0, %c0_i32 : i32, i32
  }
  func.func @transform_2(%arg0: i32) -> (i32, i32) {
    %c0_i32 = arith.constant 0 : i32
    %c0_i32_0 = arith.constant 0 : i32
    return %arg0, %c0_i32 : i32, i32
  }
  func.func @transform_3(%arg0: i32) -> (i32, i32) {
    %c0_i32 = arith.constant 0 : i32
    %c0_i32_0 = arith.constant 0 : i32
    %c0_i32_1 = arith.constant 0 : i32
    return %c0_i32, %c0_i32_0 : i32, i32
  }
  func.func @transform_4(%arg0: i32) -> (i32, i32) {
    %c0_i32 = arith.constant 0 : i32
    %c0_i32_0 = arith.constant 0 : i32
    %c0_i32_1 = arith.constant 0 : i32
    return %c0_i32, %c0_i32_0 : i32, i32
  }
  func.func @transform_5(%arg0: i32) -> (i32, i32) {
    %c0_i32 = arith.constant 0 : i32
    %c0_i32_0 = arith.constant 0 : i32
    %c0_i32_1 = arith.constant 0 : i32
    return %c0_i32, %c0_i32_0 : i32, i32
  }
  func.func @transform_6(%arg0: i32) -> (i32, i32) {
    %c0_i32 = arith.constant 0 : i32
    %c0_i32_0 = arith.constant 0 : i32
    %c0_i32_1 = arith.constant 0 : i32
    return %c0_i32, %c0_i32_0 : i32, i32
  }
  func.func @transform_7(%arg0: i32) -> (i32, i32) {
    %c0_i32 = arith.constant 0 : i32
    %c0_i32_0 = arith.constant 0 : i32
    %c0_i32_1 = arith.constant 0 : i32
    return %c0_i32, %c0_i32_0 : i32, i32
  }
  func.func @transform_8(%arg0: i32) -> (i32, i32) {
    %c0_i32 = arith.constant 0 : i32
    %c0_i32_0 = arith.constant 0 : i32
    %c0_i32_1 = arith.constant 0 : i32
    return %c0_i32, %c0_i32_0 : i32, i32
  }
  func.func @transform_9(%arg0: i32) -> (i32, i32) {
    %c0_i32 = arith.constant 0 : i32
    %c0_i32_0 = arith.constant 0 : i32
    %c0_i32_1 = arith.constant 0 : i32
    return %c0_i32, %c0_i32_0 : i32, i32
  }
  func.func @transform_10(%arg0: i32) -> (i32, i32) {
    %c0_i32 = arith.constant 0 : i32
    %c0_i32_0 = arith.constant 0 : i32
    return %arg0, %c0_i32 : i32, i32
  }
  func.func @transform_11(%arg0: i32) -> (i32, i32) {
    %c0_i32 = arith.constant 0 : i32
    %c0_i32_0 = arith.constant 0 : i32
    return %arg0, %c0_i32 : i32, i32
  }
}

</mosaic_0001>

<llo_original>
// kernel: tpu_custom_call.1
$region0: #{tpu_custom_call.1}
  #allocation0 [shape = 'u32[]', space=smem, size = 0x4, offset = 0x4, fixed_abs, tag = 'smem constant byte address 0x4 - core index']
  #allocation1 [shape = 'u32[72,128]{1,0:T(1,128)}', space=vmem, size = 0x9000, scoped, tag = 'internal scratch']
  %s0 = inlined_call_operand.vmem [shape: bf16[8,8,32], index: 0, kind: input, shape index: {}]
  %s1 = inlined_call_operand.hbm [shape: f32[8,8], index: 1, kind: input, shape index: {}]
  %s2 = inlined_call_operand.hbm [shape: f32[8,8], index: 2, kind: input, shape index: {}]
  %s3 = inlined_call_operand.hbm [shape: bf16[32,64], index: 3, kind: input, shape index: {}]
  %s4 = inlined_call_operand.vmem [shape: f32[1,32], index: 4, kind: input, shape index: {}]
  %s5 = inlined_call_operand.hbm [shape: f32[32,32], index: 5, kind: input, shape index: {}]
  %s6 = inlined_call_operand.vmem [shape: f32[1,32], index: 6, kind: input, shape index: {}]
  %s7 = inlined_call_operand.vmem [shape: f32[1,32], index: 7, kind: input, shape index: {}]
  %s8 = inlined_call_operand.vmem [shape: f32[32,3], index: 8, kind: input, shape index: {}]
  %s9 = inlined_call_operand.vmem [shape: f32[1,3], index: 9, kind: input, shape index: {}]
  %s10 = inlined_call_operand.vmem [shape: f32[8,3], index: 10, kind: output, shape index: {0}]
  %s11 = inlined_call_operand.hbm [shape: f32[8,8], index: 11, kind: output, shape index: {1}]
  %12 = xla_tuple %s10, %s11
  %s13 = sld [smem:[#allocation0]]
  $region74: #{tpu_custom_call.1} parent=0
    _
  %s15 = ssub.s32 1, %s13
  %s16 = scalar_select 0, %s15, %s13
  $region1: #{tpu_custom_call.1} parent=0
    #allocation2 [shape = 'u8[4096]{0}', space=vmem, size = 0x1000, scoped, tag = 'input window, operand 1, single buffered']
    #allocation3 [shape = 's32[1]{0}', space=sflag, size = 0x4, scoped, tag = 'scoped memory for tpu_custom_call.1']
    #allocation4 [shape = 's32[1]{0}', space=sflag, size = 0x4, scoped, tag = 'scoped memory for tpu_custom_call.1']
    #allocation5 [shape = 'u8[4096]{0}', space=vmem, size = 0x1000, scoped, tag = 'input window, operand 2, single buffered']
    #allocation6 [shape = 's32[1]{0}', space=sflag, size = 0x4, scoped, tag = 'scoped memory for tpu_custom_call.1']
    #allocation7 [shape = 'u8[8192]{0}', space=vmem, size = 0x2000, scoped, tag = 'input window, operand 3, single buffered']
    #allocation8 [shape = 'u8[16384]{0}', space=vmem, size = 0x4000, scoped, tag = 'input window, operand 5, single buffered']
    #allocation9 [shape = 's32[1]{0}', space=sflag, size = 0x4, scoped, tag = 'scoped memory for tpu_custom_call.1']
    #allocation10 [shape = 'u8[4096]{0}', space=vmem, size = 0x1000, scoped, tag = 'output window, operand 1, single buffered']
    %17 = vsyncpa [#allocation3], 0
    %18 = vsyncpa [#allocation6], 0
    %19 = vsyncpa [#allocation9], 0
    %20 = vsyncpa [#allocation4], 0
    // Predicated region
    $region2: #{tpu_custom_call.1} parent=1 // pred_check
      _
    $region3: #{tpu_custom_call.1} parent=1 // pred_check_branch
      %22 = sbr.rel (0) target = $region5
    $region4: #{tpu_custom_call.1} parent=1 // pred_region
      _
    $region5: #{tpu_custom_call.1} parent=1 // pred_fallthru
      _
    // Predicated region
    $region6: #{tpu_custom_call.1} parent=1 // pred_check
      _
    $region7: #{tpu_custom_call.1} parent=1 // pred_check_branch
      %24 = sbr.rel (0) target = $region9
    $region8: #{tpu_custom_call.1} parent=1 // pred_region
      %26 = vsyncadd [#allocation3], 0
      %s28 = sshll.u32 %s1, 4
      %s29 = int_to_ptr.hbm [resolvable:$true] %s28
      %s30 = sshll.u32 [#allocation2], 4
      %s31 = int_to_ptr.vmem [resolvable:$true] %s30
      %33 = dma.hbm_to_vmem [thread:$0]  %s29, 128, %s31, [#allocation3]
    $region9: #{tpu_custom_call.1} parent=1 // pred_fallthru
      _
    // Predicated region
    $region10: #{tpu_custom_call.1} parent=1 // pred_check
      _
    $region11: #{tpu_custom_call.1} parent=1 // pred_check_branch
      %35 = sbr.rel (0) target = $region13
    $region12: #{tpu_custom_call.1} parent=1 // pred_region
      %37 = vsyncadd [#allocation6], 0
      %s39 = sshll.u32 %s2, 4
      %s40 = int_to_ptr.hbm [resolvable:$true] %s39
      %s41 = sshll.u32 [#allocation5], 4
      %s42 = int_to_ptr.vmem [resolvable:$true] %s41
      %44 = dma.hbm_to_vmem [thread:$0]  %s40, 128, %s42, [#allocation6]
    $region13: #{tpu_custom_call.1} parent=1 // pred_fallthru
      _
    // Predicated region
    $region14: #{tpu_custom_call.1} parent=1 // pred_check
      _
    $region15: #{tpu_custom_call.1} parent=1 // pred_check_branch
      %46 = sbr.rel (0) target = $region17
    $region16: #{tpu_custom_call.1} parent=1 // pred_region
      %48 = vsyncadd [#allocation6], 0
      %s49 = sshll.u32 %s3, 4
      %s50 = int_to_ptr.hbm [resolvable:$true] %s49
      %s51 = sshll.u32 [#allocation7], 4
      %s52 = int_to_ptr.vmem [resolvable:$true] %s51
      %57 = dma.hbm_to_vmem [thread:$0]  %s50, 256, %s52, [#allocation6], 64, 64, 4
    $region17: #{tpu_custom_call.1} parent=1 // pred_fallthru
      _
    // Predicated region
    $region18: #{tpu_custom_call.1} parent=1 // pred_check
      _
    $region19: #{tpu_custom_call.1} parent=1 // pred_check_branch
      %59 = sbr.rel (0) target = $region21
    $region20: #{tpu_custom_call.1} parent=1 // pred_region
      _
    $region21: #{tpu_custom_call.1} parent=1 // pred_fallthru
      _
    // Predicated region
    $region22: #{tpu_custom_call.1} parent=1 // pred_check
      _
    $region23: #{tpu_custom_call.1} parent=1 // pred_check_branch
      %61 = sbr.rel (0) target = $region25
    $region24: #{tpu_custom_call.1} parent=1 // pred_region
      %63 = vsyncadd [#allocation9], 0
      %s64 = sshll.u32 %s5, 4
      %s65 = int_to_ptr.hbm [resolvable:$true] %s64
      %s66 = sshll.u32 [#allocation8], 4
      %s67 = int_to_ptr.vmem [resolvable:$true] %s66
      %72 = dma.hbm_to_vmem [thread:$0]  %s65, 512, %s67, [#allocation9], 128, 128, 8
    $region25: #{tpu_custom_call.1} parent=1 // pred_fallthru
      _
    // Predicated region
    $region26: #{tpu_custom_call.1} parent=1 // pred_check
      _
    $region27: #{tpu_custom_call.1} parent=1 // pred_check_branch
      %74 = sbr.rel (0) target = $region29
    $region28: #{tpu_custom_call.1} parent=1 // pred_region
      _
    $region29: #{tpu_custom_call.1} parent=1 // pred_fallthru
      _
    // Predicated region
    $region30: #{tpu_custom_call.1} parent=1 // pred_check
      _
    $region31: #{tpu_custom_call.1} parent=1 // pred_check_branch
      %76 = sbr.rel (0) target = $region33
    $region32: #{tpu_custom_call.1} parent=1 // pred_region
      _
    $region33: #{tpu_custom_call.1} parent=1 // pred_fallthru
      _
    // Predicated region
    $region34: #{tpu_custom_call.1} parent=1 // pred_check
      _
    $region35: #{tpu_custom_call.1} parent=1 // pred_check_branch
      %78 = sbr.rel (0) target = $region37
    $region36: #{tpu_custom_call.1} parent=1 // pred_region
      _
    $region37: #{tpu_custom_call.1} parent=1 // pred_fallthru
      _
    // Predicated region
    $region38: #{tpu_custom_call.1} parent=1 // pred_check
      _
    $region39: #{tpu_custom_call.1} parent=1 // pred_check_branch
      %80 = sbr.rel (0) target = $region41
    $region40: #{tpu_custom_call.1} parent=1 // pred_region
      _
    $region41: #{tpu_custom_call.1} parent=1 // pred_fallthru
      _
    // Predicated region
    $region42: #{tpu_custom_call.1} parent=1 // pred_check
      _
    $region43: #{tpu_custom_call.1} parent=1 // pred_check_branch
      %82 = sbr.rel (0) target = $region45
    $region44: #{tpu_custom_call.1} parent=1 // pred_region
      %84 = dma.done [#allocation3], 128
    $region45: #{tpu_custom_call.1} parent=1 // pred_fallthru
      _
    // Predicated region
    $region46: #{tpu_custom_call.1} parent=1 // pred_check
      _
    $region47: #{tpu_custom_call.1} parent=1 // pred_check_branch
      %86 = sbr.rel (0) target = $region49
    $region48: #{tpu_custom_call.1} parent=1 // pred_region
      %88 = dma.done [#allocation6], 128
    $region49: #{tpu_custom_call.1} parent=1 // pred_fallthru
      _
    // Predicated region
    $region50: #{tpu_custom_call.1} parent=1 // pred_check
      _
    $region51: #{tpu_custom_call.1} parent=1 // pred_check_branch
      %90 = sbr.rel (0) target = $region53
    $region52: #{tpu_custom_call.1} parent=1 // pred_region
      %92 = dma.done [#allocation6], 256
    $region53: #{tpu_custom_call.1} parent=1 // pred_fallthru
      _
    // Predicated region
    $region54: #{tpu_custom_call.1} parent=1 // pred_check
      _
    $region55: #{tpu_custom_call.1} parent=1 // pred_check_branch
      %94 = sbr.rel (0) target = $region57
    $region56: #{tpu_custom_call.1} parent=1 // pred_region
      %96 = dma.done [#allocation9], 512
    $region57: #{tpu_custom_call.1} parent=1 // pred_fallthru
      _
    %v98 = vld [vmem:[%s0] sm:$0xf]
    %v99 = vld [vmem:[%s0 + $0x4] sm:$0xf]
    %v100 = vld [vmem:[%s0 + $0x8] sm:$0xf]
    %v101 = vld [vmem:[%s0 + $0xc] sm:$0xf]
    %v102 = vld [vmem:[%s0 + $0x10] sm:$0xf]
    %v103 = vld [vmem:[%s0 + $0x14] sm:$0xf]
    %v104 = vld [vmem:[%s0 + $0x18] sm:$0xf]
    %v105 = vld [vmem:[%s0 + $0x1c] sm:$0xf]
    %v106 = vld [vmem:[#allocation2] sm:$0xff]
    %v107 = vld [vmem:[#allocation5] sm:$0xff]
    %v108 = vld [vmem:[#allocation7] sm:$0xf]
    %v109 = vld [vmem:[#allocation7 + $0x4] sm:$0xf]
    %v110 = vld [vmem:[#allocation7 + $0x8] sm:$0xf]
    %v111 = vld [vmem:[#allocation7 + $0xc] sm:$0xf]
    %v120 = vunpack.c.l.b16 %v98
    %v121 = vunpack.c.l.b16 %v99
    %v122 = vunpack.c.l.b16 %v100
    %v123 = vunpack.c.l.b16 %v101
    %v124 = vunpack.c.l.b16 %v102
    %v125 = vunpack.c.l.b16 %v103
    %v126 = vunpack.c.l.b16 %v104
    %v127 = vunpack.c.l.b16 %v105
    %v128 = vpack.c.b16 %v121, %v120
    %v129 = vpack.c.b16 %v123, %v122
    %v130 = vpack.c.b16 %v125, %v124
    %v131 = vpack.c.b16 %v127, %v126
    %v136 = vunpack.c.l.b16 %v108
    %v137 = vunpack.c.l.b16 %v109
    %v138 = vunpack.c.l.b16 %v110
    %v139 = vunpack.c.l.b16 %v111
    %v140 = vpack.c.b16 %v137, %v136
    %v141 = vpack.c.b16 %v139, %v138
    %vm144 = vcmask 261120
    %v146 = vsel %vm144, %v128, 0
    %v149 = vsel %vm144, %v129, 0
    %v152 = vsel %vm144, %v130, 0
    %v155 = vsel %vm144, %v131, 0
    %157 = vmatpush.bf16.msra.mxu0 0
    %158 = vmatpush.bf16.msra.mxu0 0
    %159 = vmatpush.bf16.msra.mxu0 0
    %160 = vmatpush.bf16.msra.mxu0 0
    %161 = vmatpush.bf16.msra.mxu0 0
    %162 = vmatpush.bf16.msra.mxu0 0
    %163 = vmatpush.bf16.msra.mxu0 %v141
    %164 = vmatpush.bf16.msra.mxu0 %v140
    %165 = vmatmul.bf16.gmra.mxu0 %v146
    %v166 = vpop.f32.mrf.mxu0
    %v167 = vadd.f32 0.0, %v166
    %v168 = vpop.f32.mrf.mxu0
    %v169 = vadd.f32 0.0, %v168
    %170 = vmatmul.bf16.gmra.mxu0 %v149
    %v171 = vpop.f32.mrf.mxu0
    %v172 = vadd.f32 0.0, %v171
    %v173 = vpop.f32.mrf.mxu0
    %v174 = vadd.f32 0.0, %v173
    %175 = vmatmul.bf16.gmra.mxu0 %v152
    %v176 = vpop.f32.mrf.mxu0
    %v177 = vadd.f32 0.0, %v176
    %v178 = vpop.f32.mrf.mxu0
    %v179 = vadd.f32 0.0, %v178
    %180 = vmatmul.bf16.gmra.mxu0 %v155
    %v181 = vpop.f32.mrf.mxu0
    %v182 = vadd.f32 0.0, %v181
    %v183 = vpop.f32.mrf.mxu0
    %v184 = vadd.f32 0.0, %v183
    %185 = vdwg.mxu0
    %v186 = vperm.slane %v106, 0
    %v187 = vlaneseq
    %v188 = vshrl.u32 %v187, 7
    %190 = vset.pattern.permute.xlu0 %v188
    %191 = vperm.xlu0 %190, %v186
    %v192 = vpop.permute.xlu0 %191
    %v193 = vperm.slane %v106, 1
    %v194 = vlaneseq
    %v195 = vshrl.u32 %v194, 7
    %197 = vset.pattern.permute.xlu0 %v195
    %198 = vperm.xlu0 %197, %v193
    %v199 = vpop.permute.xlu0 %198
    %v200 = vperm.slane %v106, 2
    %v201 = vlaneseq
    %v202 = vshrl.u32 %v201, 7
    %204 = vset.pattern.permute.xlu0 %v202
    %205 = vperm.xlu0 %204, %v200
    %v206 = vpop.permute.xlu0 %205
    %v207 = vperm.slane %v106, 3
    %v208 = vlaneseq
    %v209 = vshrl.u32 %v208, 7
    %211 = vset.pattern.permute.xlu0 %v209
    %212 = vperm.xlu0 %211, %v207
    %v213 = vpop.permute.xlu0 %212
    %v214 = vperm.slane %v106, 4
    %v215 = vlaneseq
    %v216 = vshrl.u32 %v215, 7
    %218 = vset.pattern.permute.xlu0 %v216
    %219 = vperm.xlu0 %218, %v214
    %v220 = vpop.permute.xlu0 %219
    %v221 = vperm.slane %v106, 5
    %v222 = vlaneseq
    %v223 = vshrl.u32 %v222, 7
    %225 = vset.pattern.permute.xlu0 %v223
    %226 = vperm.xlu0 %225, %v221
    %v227 = vpop.permute.xlu0 %226
    %v228 = vperm.slane %v106, 6
    %v229 = vlaneseq
    %v230 = vshrl.u32 %v229, 7
    %232 = vset.pattern.permute.xlu0 %v230
    %233 = vperm.xlu0 %232, %v228
    %v234 = vpop.permute.xlu0 %233
    %v235 = vperm.slane %v106, 7
    %v236 = vlaneseq
    %v237 = vshrl.u32 %v236, 7
    %239 = vset.pattern.permute.xlu0 %v237
    %240 = vperm.xlu0 %239, %v235
    %v241 = vpop.permute.xlu0 %240
    %v242 = vmul.f32 %v192, %v167
    %v243 = vmul.f32 %v199, %v169
    %v244 = vmul.f32 %v206, %v172
    %v245 = vmul.f32 %v213, %v174
    %v246 = vmul.f32 %v220, %v177
    %v247 = vmul.f32 %v227, %v179
    %v248 = vmul.f32 %v234, %v182
    %v249 = vmul.f32 %v241, %v184
    %vm250 = vcmask 523520
    %v251 = vsel %vm250, %v242, 0.0
    %v252 = vrot.slane %v251, 4
    %v253 = vadd.f32 %v251, %v252
    %v254 = vrot.slane %v253, 2
    %v255 = vadd.f32 %v253, %v254
    %v256 = vrot.slane %v255, 1
    %v257 = vadd.f32 %v255, %v256
    %v258 = vsel %vm250, %v243, 0.0
    %v259 = vrot.slane %v258, 4
    %v260 = vadd.f32 %v258, %v259
    %v261 = vrot.slane %v260, 2
    %v262 = vadd.f32 %v260, %v261
    %v263 = vrot.slane %v262, 1
    %v264 = vadd.f32 %v262, %v263
    %v265 = vsel %vm250, %v244, 0.0
    %v266 = vrot.slane %v265, 4
    %v267 = vadd.f32 %v265, %v266
    %v268 = vrot.slane %v267, 2
    %v269 = vadd.f32 %v267, %v268
    %v270 = vrot.slane %v269, 1
    %v271 = vadd.f32 %v269, %v270
    %v272 = vsel %vm250, %v245, 0.0
    %v273 = vrot.slane %v272, 4
    %v274 = vadd.f32 %v272, %v273
    %v275 = vrot.slane %v274, 2
    %v276 = vadd.f32 %v274, %v275
    %v277 = vrot.slane %v276, 1
    %v278 = vadd.f32 %v276, %v277
    %v279 = vsel %vm250, %v246, 0.0
    %v280 = vrot.slane %v279, 4
    %v281 = vadd.f32 %v279, %v280
    %v282 = vrot.slane %v281, 2
    %v283 = vadd.f32 %v281, %v282
    %v284 = vrot.slane %v283, 1
    %v285 = vadd.f32 %v283, %v284
    %v286 = vsel %vm250, %v247, 0.0
    %v287 = vrot.slane %v286, 4
    %v288 = vadd.f32 %v286, %v287
    %v289 = vrot.slane %v288, 2
    %v290 = vadd.f32 %v288, %v289
    %v291 = vrot.slane %v290, 1
    %v292 = vadd.f32 %v290, %v291
    %v293 = vsel %vm250, %v248, 0.0
    %v294 = vrot.slane %v293, 4
    %v295 = vadd.f32 %v293, %v294
    %v296 = vrot.slane %v295, 2
    %v297 = vadd.f32 %v295, %v296
    %v298 = vrot.slane %v297, 1
    %v299 = vadd.f32 %v297, %v298
    %v300 = vsel %vm250, %v249, 0.0
    %v301 = vrot.slane %v300, 4
    %v302 = vadd.f32 %v300, %v301
    %v303 = vrot.slane %v302, 2
    %v304 = vadd.f32 %v302, %v303
    %v305 = vrot.slane %v304, 1
    %v306 = vadd.f32 %v304, %v305
    %v307 = vld [vmem:[%s4] sm:$0x1]
    %v309 = vperm.slane %v307, 0
    %310 = vrot.lane.b32.xlu0 %v309, 32
    %v311 = vpop.permute.xlu0 %310
    %v313 = vadd.f32 %v257, %v311
    %v314 = vadd.f32 %v264, %v311
    %v315 = vadd.f32 %v271, %v311
    %v316 = vadd.f32 %v278, %v311
    %v317 = vadd.f32 %v285, %v311
    %v318 = vadd.f32 %v292, %v311
    %v319 = vadd.f32 %v299, %v311
    %v320 = vadd.f32 %v306, %v311
    %v321 = vld [vmem:[#allocation8] sm:$0xff]
    %v322 = vld [vmem:[#allocation8 + $0x8] sm:$0xff]
    %v323 = vld [vmem:[#allocation8 + $0x10] sm:$0xff]
    %v324 = vld [vmem:[#allocation8 + $0x18] sm:$0xff]
    %v333 = vrot.slane %v314, 7
    %vm334 = vcmask 1041409
    %v335 = vsel %vm334, %v333, %v313
    %v336 = vrot.slane %v315, 6
    %vm337 = vcmask 1042434
    %v338 = vsel %vm337, %v336, %v335
    %v339 = vrot.slane %v316, 5
    %vm340 = vcmask 1043459
    %v341 = vsel %vm340, %v339, %v338
    %v342 = vrot.slane %v317, 4
    %vm343 = vcmask 1044484
    %v344 = vsel %vm343, %v342, %v341
    %v345 = vrot.slane %v318, 3
    %vm346 = vcmask 1045509
    %v347 = vsel %vm346, %v345, %v344
    %v348 = vrot.slane %v319, 2
    %vm349 = vcmask 1046534
    %v350 = vsel %vm349, %v348, %v347
    %v351 = vrot.slane %v320, 1
    %vm352 = vcmask 1047559
    %v353 = vsel %vm352, %v351, %v350
    %354 = vrot.lane.b32.xlu0 %v353, 96
    %v355 = vpop.permute.xlu0 %354
    %v356 = vsel %vm144, %v355, 0
    %358 = vmatpush.msra.mxu0 0.0
    %359 = vmatpush.msra.mxu0 0.0
    %360 = vmatpush.msra.mxu0 0.0
    %361 = vmatpush.msra.mxu0 0.0
    %362 = vmatpush.msra.mxu0 0.0
    %363 = vmatpush.msra.mxu0 0.0
    %364 = vmatpush.msra.mxu0 0.0
    %365 = vmatpush.msra.mxu0 0.0
    %366 = vmatpush.msra.mxu0 0.0
    %367 = vmatpush.msra.mxu0 0.0
    %368 = vmatpush.msra.mxu0 0.0
    %369 = vmatpush.msra.mxu0 0.0
    %370 = vmatpush.msra.mxu0 %v324
    %371 = vmatpush.msra.mxu0 %v323
    %372 = vmatpush.msra.mxu0 %v322
    %373 = vmatpush.msra.mxu0 %v321
    %374 = vmatmul.f32.gmra.mxu0 %v356
    %v375 = vpop.f32.mrf.mxu0
    %v376 = vadd.f32 0.0, %v375
    %377 = vdwg.mxu0
    %v379 = vrot.slane %v376, 1
    %v380 = vrot.slane %v376, 2
    %v381 = vrot.slane %v376, 3
    %v382 = vrot.slane %v376, 4
    %v383 = vrot.slane %v376, 5
    %v384 = vrot.slane %v376, 6
    %v385 = vrot.slane %v376, 7
    %v386 = vperm.slane %v376, 0
    %v387 = vperm.slane %v379, 0
    %v388 = vperm.slane %v380, 0
    %v389 = vperm.slane %v381, 0
    %v390 = vperm.slane %v382, 0
    %v391 = vperm.slane %v383, 0
    %v392 = vperm.slane %v384, 0
    %v393 = vperm.slane %v385, 0
    %v402 = vadd.f32 %v167, %v386
    %v403 = vadd.f32 %v169, %v387
    %v404 = vadd.f32 %v172, %v388
    %v405 = vadd.f32 %v174, %v389
    %v406 = vadd.f32 %v177, %v390
    %v407 = vadd.f32 %v179, %v391
    %v408 = vadd.f32 %v182, %v392
    %v409 = vadd.f32 %v184, %v393
    %v410 = vld [vmem:[%s6] sm:$0x1]
    %v412 = vperm.slane %v410, 0
    %v414 = vadd.f32 %v402, %v412
    %v415 = vadd.f32 %v403, %v412
    %v416 = vadd.f32 %v404, %v412
    %v417 = vadd.f32 %v405, %v412
    %v418 = vadd.f32 %v406, %v412
    %v419 = vadd.f32 %v407, %v412
    %v420 = vadd.f32 %v408, %v412
    %v421 = vadd.f32 %v409, %v412
    %v422 = vtanh.pop %v414
    %v423 = vtanh.pop %v415
    %v424 = vtanh.pop %v416
    %v425 = vtanh.pop %v417
    %v426 = vtanh.pop %v418
    %v427 = vtanh.pop %v419
    %v428 = vtanh.pop %v420
    %v429 = vtanh.pop %v421
    %v430 = vld [vmem:[%s7] sm:$0x1]
    %v432 = vperm.slane %v430, 0
    %v434 = vmul.f32 %v422, %v432
    %v435 = vmul.f32 %v423, %v432
    %v436 = vmul.f32 %v424, %v432
    %v437 = vmul.f32 %v425, %v432
    %v438 = vmul.f32 %v426, %v432
    %v439 = vmul.f32 %v427, %v432
    %v440 = vmul.f32 %v428, %v432
    %v441 = vmul.f32 %v429, %v432
    %v442 = vsel %vm144, %v434, 0.0
    %443 = vadd.xlane.f32.xlu0 %v442
    %v444 = vpop.xlane.xlu0 %443
    %v445 = vsel %vm144, %v435, 0.0
    %446 = vadd.xlane.f32.xlu0 %v445
    %v447 = vpop.xlane.xlu0 %446
    %v448 = vsel %vm144, %v436, 0.0
    %449 = vadd.xlane.f32.xlu0 %v448
    %v450 = vpop.xlane.xlu0 %449
    %v451 = vsel %vm144, %v437, 0.0
    %452 = vadd.xlane.f32.xlu0 %v451
    %v453 = vpop.xlane.xlu0 %452
    %v454 = vsel %vm144, %v438, 0.0
    %455 = vadd.xlane.f32.xlu0 %v454
    %v456 = vpop.xlane.xlu0 %455
    %v457 = vsel %vm144, %v439, 0.0
    %458 = vadd.xlane.f32.xlu0 %v457
    %v459 = vpop.xlane.xlu0 %458
    %v460 = vsel %vm144, %v440, 0.0
    %461 = vadd.xlane.f32.xlu0 %v460
    %v462 = vpop.xlane.xlu0 %461
    %v463 = vsel %vm144, %v441, 0.0
    %464 = vadd.xlane.f32.xlu0 %v463
    %v465 = vpop.xlane.xlu0 %464
    %vm466 = vcmp.gt.f32.partialorder %v107, 0.0
    %v475 = vlaneseq
    %v476 = vand.u32 %v475, 127
    %v477 = vperm.slane %v444, %v476
    %v478 = vperm.slane %v447, %v476
    %v479 = vperm.slane %v450, %v476
    %v480 = vperm.slane %v453, %v476
    %v481 = vperm.slane %v456, %v476
    %v482 = vperm.slane %v459, %v476
    %v483 = vperm.slane %v462, %v476
    %v484 = vperm.slane %v465, %v476
    %v485 = vsel %vm334, %v478, %v477
    %v486 = vsel %vm337, %v479, %v485
    %v487 = vsel %vm340, %v480, %v486
    %v488 = vsel %vm343, %v481, %v487
    %v489 = vsel %vm346, %v482, %v488
    %v490 = vsel %vm349, %v483, %v489
    %v491 = vsel %vm352, %v484, %v490
    %v493 = vsel %vm466, %v491, -1e+30
    %vm494 = vcmask 64512
    %v495 = vsel %vm494, %v493, -inf
    %496 = vmax.xlane.f32.xlu0 %v495
    %v497 = vpop.xlane.xlu0 %496
    %v498 = vsub.f32 %v493, %v497
    %v499 = vmul.f32 %v498, 1.442695
    %v500 = vpow.pop %v499
    %v501 = vsel %vm494, %v500, 0.0
    %502 = vadd.xlane.f32.xlu0 %v501
    %v503 = vpop.xlane.xlu0 %502
    %v504 = vrcp.pop %v503
    %v505 = vmul.f32 %v500, %v504
    %v506 = vperm.slane %v505, 0
    %v507 = vlaneseq
    %v508 = vshrl.u32 %v507, 7
    %510 = vset.pattern.permute.xlu0 %v508
    %511 = vperm.xlu0 %510, %v506
    %v512 = vpop.permute.xlu0 %511
    %v513 = vperm.slane %v505, 1
    %v514 = vlaneseq
    %v515 = vshrl.u32 %v514, 7
    %517 = vset.pattern.permute.xlu0 %v515
    %518 = vperm.xlu0 %517, %v513
    %v519 = vpop.permute.xlu0 %518
    %v520 = vperm.slane %v505, 2
    %v521 = vlaneseq
    %v522 = vshrl.u32 %v521, 7
    %524 = vset.pattern.permute.xlu0 %v522
    %525 = vperm.xlu0 %524, %v520
    %v526 = vpop.permute.xlu0 %525
    %v527 = vperm.slane %v505, 3
    %v528 = vlaneseq
    %v529 = vshrl.u32 %v528, 7
    %531 = vset.pattern.permute.xlu0 %v529
    %532 = vperm.xlu0 %531, %v527
    %v533 = vpop.permute.xlu0 %532
    %v534 = vperm.slane %v505, 4
    %v535 = vlaneseq
    %v536 = vshrl.u32 %v535, 7
    %538 = vset.pattern.permute.xlu0 %v536
    %539 = vperm.xlu0 %538, %v534
    %v540 = vpop.permute.xlu0 %539
    %v541 = vperm.slane %v505, 5
    %v542 = vlaneseq
    %v543 = vshrl.u32 %v542, 7
    %545 = vset.pattern.permute.xlu0 %v543
    %546 = vperm.xlu0 %545, %v541
    %v547 = vpop.permute.xlu0 %546
    %v548 = vperm.slane %v505, 6
    %v549 = vlaneseq
    %v550 = vshrl.u32 %v549, 7
    %552 = vset.pattern.permute.xlu0 %v550
    %553 = vperm.xlu0 %552, %v548
    %v554 = vpop.permute.xlu0 %553
    %v555 = vperm.slane %v505, 7
    %v556 = vlaneseq
    %v557 = vshrl.u32 %v556, 7
    %559 = vset.pattern.permute.xlu0 %v557
    %560 = vperm.xlu0 %559, %v555
    %v561 = vpop.permute.xlu0 %560
    %v562 = vunpack.c.l.bf16 %v98
    %v563 = vunpack.c.l.bf16 %v99
    %v564 = vunpack.c.l.bf16 %v100
    %v565 = vunpack.c.l.bf16 %v101
    %v566 = vunpack.c.l.bf16 %v102
    %v567 = vunpack.c.l.bf16 %v103
    %v568 = vunpack.c.l.bf16 %v104
    %v569 = vunpack.c.l.bf16 %v105
    %v570 = vmul.f32 %v512, %v562
    %v571 = vmul.f32 %v519, %v563
    %v572 = vmul.f32 %v526, %v564
    %v573 = vmul.f32 %v533, %v565
    %v574 = vmul.f32 %v540, %v566
    %v575 = vmul.f32 %v547, %v567
    %v576 = vmul.f32 %v554, %v568
    %v577 = vmul.f32 %v561, %v569
    %v578 = vsel %vm144, %v570, 0.0
    %v579 = vrot.slane %v578, 4
    %v580 = vadd.f32 %v578, %v579
    %v581 = vrot.slane %v580, 2
    %v582 = vadd.f32 %v580, %v581
    %v583 = vrot.slane %v582, 1
    %v584 = vadd.f32 %v582, %v583
    %v585 = vsel %vm144, %v571, 0.0
    %v586 = vrot.slane %v585, 4
    %v587 = vadd.f32 %v585, %v586
    %v588 = vrot.slane %v587, 2
    %v589 = vadd.f32 %v587, %v588
    %v590 = vrot.slane %v589, 1
    %v591 = vadd.f32 %v589, %v590
    %v592 = vsel %vm144, %v572, 0.0
    %v593 = vrot.slane %v592, 4
    %v594 = vadd.f32 %v592, %v593
    %v595 = vrot.slane %v594, 2
    %v596 = vadd.f32 %v594, %v595
    %v597 = vrot.slane %v596, 1
    %v598 = vadd.f32 %v596, %v597
    %v599 = vsel %vm144, %v573, 0.0
    %v600 = vrot.slane %v599, 4
    %v601 = vadd.f32 %v599, %v600
    %v602 = vrot.slane %v601, 2
    %v603 = vadd.f32 %v601, %v602
    %v604 = vrot.slane %v603, 1
    %v605 = vadd.f32 %v603, %v604
    %v606 = vsel %vm144, %v574, 0.0
    %v607 = vrot.slane %v606, 4
    %v608 = vadd.f32 %v606, %v607
    %v609 = vrot.slane %v608, 2
    %v610 = vadd.f32 %v608, %v609
    %v611 = vrot.slane %v610, 1
    %v612 = vadd.f32 %v610, %v611
    %v613 = vsel %vm144, %v575, 0.0
    %v614 = vrot.slane %v613, 4
    %v615 = vadd.f32 %v613, %v614
    %v616 = vrot.slane %v615, 2
    %v617 = vadd.f32 %v615, %v616
    %v618 = vrot.slane %v617, 1
    %v619 = vadd.f32 %v617, %v618
    %v620 = vsel %vm144, %v576, 0.0
    %v621 = vrot.slane %v620, 4
    %v622 = vadd.f32 %v620, %v621
    %v623 = vrot.slane %v622, 2
    %v624 = vadd.f32 %v622, %v623
    %v625 = vrot.slane %v624, 1
    %v626 = vadd.f32 %v624, %v625
    %v627 = vsel %vm144, %v577, 0.0
    %v628 = vrot.slane %v627, 4
    %v629 = vadd.f32 %v627, %v628
    %v630 = vrot.slane %v629, 2
    %v631 = vadd.f32 %v629, %v630
    %v632 = vrot.slane %v631, 1
    %v633 = vadd.f32 %v631, %v632
    %634 = vrot.lane.b32.xlu0 %v313, 96
    %v635 = vpop.permute.xlu0 %634
    %636 = vrot.lane.b32.xlu0 %v314, 96
    %v637 = vpop.permute.xlu0 %636
    %638 = vrot.lane.b32.xlu0 %v315, 96
    %v639 = vpop.permute.xlu0 %638
    %640 = vrot.lane.b32.xlu0 %v316, 96
    %v641 = vpop.permute.xlu0 %640
    %642 = vrot.lane.b32.xlu0 %v317, 96
    %v643 = vpop.permute.xlu0 %642
    %644 = vrot.lane.b32.xlu0 %v318, 96
    %v645 = vpop.permute.xlu0 %644
    %646 = vrot.lane.b32.xlu0 %v319, 96
    %v647 = vpop.permute.xlu0 %646
    %648 = vrot.lane.b32.xlu0 %v320, 96
    %v649 = vpop.permute.xlu0 %648
    %v658 = vadd.f32 %v584, %v635
    %v659 = vadd.f32 %v591, %v637
    %v660 = vadd.f32 %v598, %v639
    %v661 = vadd.f32 %v605, %v641
    %v662 = vadd.f32 %v612, %v643
    %v663 = vadd.f32 %v619, %v645
    %v664 = vadd.f32 %v626, %v647
    %v665 = vadd.f32 %v633, %v649
    %v666 = vld [vmem:[%s8] sm:$0xff]
    %v667 = vld [vmem:[%s8 + $0x8] sm:$0xff]
    %v668 = vld [vmem:[%s8 + $0x10] sm:$0xff]
    %v669 = vld [vmem:[%s8 + $0x18] sm:$0xff]
    %v670 = vld [vmem:[%s9] sm:$0x1]
    %v672 = vperm.slane %v670, 0
    %v682 = vrot.slane %v659, 7
    %v683 = vsel %vm334, %v682, %v658
    %v684 = vrot.slane %v660, 6
    %v685 = vsel %vm337, %v684, %v683
    %v686 = vrot.slane %v661, 5
    %v687 = vsel %vm340, %v686, %v685
    %v688 = vrot.slane %v662, 4
    %v689 = vsel %vm343, %v688, %v687
    %v690 = vrot.slane %v663, 3
    %v691 = vsel %vm346, %v690, %v689
    %v692 = vrot.slane %v664, 2
    %v693 = vsel %vm349, %v692, %v691
    %v694 = vrot.slane %v665, 1
    %v695 = vsel %vm352, %v694, %v693
    %v696 = vsel %vm144, %v695, 0
    %698 = vmatpush.msra.mxu0 0.0
    %699 = vmatpush.msra.mxu0 0.0
    %700 = vmatpush.msra.mxu0 0.0
    %701 = vmatpush.msra.mxu0 0.0
    %702 = vmatpush.msra.mxu0 0.0
    %703 = vmatpush.msra.mxu0 0.0
    %704 = vmatpush.msra.mxu0 0.0
    %705 = vmatpush.msra.mxu0 0.0
    %706 = vmatpush.msra.mxu0 0.0
    %707 = vmatpush.msra.mxu0 0.0
    %708 = vmatpush.msra.mxu0 0.0
    %709 = vmatpush.msra.mxu0 0.0
    %710 = vmatpush.msra.mxu0 %v669
    %711 = vmatpush.msra.mxu0 %v668
    %712 = vmatpush.msra.mxu0 %v667
    %713 = vmatpush.msra.mxu0 %v666
    %714 = vmatmul.f32.gmra.mxu0 %v696
    %v715 = vpop.f32.mrf.mxu0
    %v716 = vadd.f32 %v672, %v715
    %717 = vdwg.mxu0
    %vm718 = vcmask 23552
    %719 = vst.msk [vmem:[%s10] sm:$0xff] %vm718, %v716
    %720 = vst.msk [vmem:[#allocation10] sm:$0xff] %vm494, %v505
    // Predicated region
    $region58: #{tpu_custom_call.1} parent=1 // pred_check
      _
    $region59: #{tpu_custom_call.1} parent=1 // pred_check_branch
      %722 = sbr.rel (0) target = $region61
    $region60: #{tpu_custom_call.1} parent=1 // pred_region
      _
    $region61: #{tpu_custom_call.1} parent=1 // pred_fallthru
      _
    // Predicated region
    $region62: #{tpu_custom_call.1} parent=1 // pred_check
      _
    $region63: #{tpu_custom_call.1} parent=1 // pred_check_branch
      %724 = sbr.rel (0) target = $region65
    $region64: #{tpu_custom_call.1} parent=1 // pred_region
      %726 = vsyncadd [#allocation4], 0
      %s728 = sshll.u32 [#allocation10], 4
      %s729 = int_to_ptr.vmem [resolvable:$true] %s728
      %s730 = sshll.u32 %s11, 4
      %s731 = int_to_ptr.hbm [resolvable:$true] %s730
      %733 = dma.vmem_to_hbm [thread:$0]  %s729, 128, %s731, [#allocation4]
    $region65: #{tpu_custom_call.1} parent=1 // pred_fallthru
      _
    // Predicated region
    $region66: #{tpu_custom_call.1} parent=1 // pred_check
      _
    $region67: #{tpu_custom_call.1} parent=1 // pred_check_branch
      %735 = sbr.rel (0) target = $region69
    $region68: #{tpu_custom_call.1} parent=1 // pred_region
      _
    $region69: #{tpu_custom_call.1} parent=1 // pred_fallthru
      _
    // Predicated region
    $region70: #{tpu_custom_call.1} parent=1 // pred_check
      _
    $region71: #{tpu_custom_call.1} parent=1 // pred_check_branch
      %737 = sbr.rel (0) target = $region73
    $region72: #{tpu_custom_call.1} parent=1 // pred_region
      %739 = dma.done [#allocation4], 128
    $region73: #{tpu_custom_call.1} parent=1 // pred_fallthru
      _
    %740 = vsyncpa [#allocation3], 1
    %741 = vsyncpa [#allocation6], 1
    %742 = vsyncpa [#allocation9], 1
    %743 = vsyncpa [#allocation4], 1

</llo_original>
